<compile_context>
chip_gen: v6e
topology: v6e:2x2x1
jax: 0.10.0
libtpu: 0.0.40
codegen_flags: <defaults>
</compile_context>

<pallas_src>
import jax
import jax.numpy as jnp
from jax.experimental import pallas as pl
from jax.experimental.pallas import tpu as pltpu


def _freq_self_attn_kernel(x_ref, p_ref, out_ref, attn_ref):
    # x: (TB, N, D) float32
    # p: (D+3, H) float32 packed params: rows [0:D]=W1, [D]=b1, [D+1]=w2,
    #    [D+2]=b2 (broadcast along the row).
    TB, N, D = x_ref.shape
    H = p_ref.shape[1]

    x = x_ref[...]                                   # (TB, N, D)
    w1 = p_ref[0:D, :]                               # (D, H)
    b1 = p_ref[D, :]                                 # (H,)
    w2 = p_ref[D + 1, :]                             # (H,)
    b2 = p_ref[D + 2, 0]                             # scalar

    # --- Linear 1 + tanh: one flat 2-D MXU matmul ---------------------------
    xf = x.reshape(TB * N, D)                        # lane dim (D) unchanged
    h = jnp.tanh(
        jnp.dot(xf, w1, preferred_element_type=jnp.float32) + b1[None, :]
    )                                                # (TB*N, H)

    # --- Linear 2 (scalar score per band) -----------------------------------
    h3 = h.reshape(TB, N, H)                         # split leading dim only
    logits = jnp.sum(h3 * w2[None, None, :], axis=-1) + b2      # (TB, N)

    # --- Softmax over the bands axis ----------------------------------------
    m = jnp.max(logits, axis=1, keepdims=True)
    e = jnp.exp(logits - m)
    denom = jnp.sum(e, axis=1, keepdims=True)
    attn = e * pl.reciprocal(denom, approx=False)    # (TB, N)
    attn_ref[...] = attn

    # --- Weighted combine as a contraction (no attn relayout) ---------------
    comb = jnp.einsum('bqn,bnd->bqd', attn[:, None, :], x,
                      preferred_element_type=jnp.float32)       # (TB, 1, D)
    out_ref[...] = comb[:, 0, :]


def frequency_self_attention(band_embeddings, w1, b1, w2, b2, *,
                             batch_block=128):
    """band_embeddings: (B, N, D). Returns (combined (B, D), attn (B, N))."""
    x = band_embeddings.astype(jnp.float32)
    B, N, D = x.shape
    H = w1.shape[-1]

    # Pack all parameters into a single contiguous (D+3, H) buffer so the
    # kernel sees exactly two inputs (activations + params).
    params = jnp.concatenate(
        [
            w1.astype(jnp.float32).reshape(D, H),
            b1.astype(jnp.float32).reshape(1, H),
            w2.astype(jnp.float32).reshape(1, H),
            jnp.full((1, H), jnp.asarray(b2, jnp.float32).reshape(())),
        ],
        axis=0,
    )                                                # (D+3, H)

    # Grid over the batch axis; TB rows of (N, D) per step.  For tiny B this
    # collapses to a single step; for large B it pipelines and (on v7x) the
    # "parallel" axis is split across the two TensorCores.
    TB = min(batch_block, B)
    Bp = ((B + TB - 1) // TB) * TB
    if Bp != B:
        x = jnp.pad(x, ((0, Bp - B), (0, 0), (0, 0)))

    combined, attn = pl.pallas_call(
        _freq_self_attn_kernel,
        out_shape=(
            jax.ShapeDtypeStruct((Bp, D), jnp.float32),
            jax.ShapeDtypeStruct((Bp, N), jnp.float32),
        ),
        grid=(Bp // TB,),
        in_specs=[
            pl.BlockSpec((TB, N, D), lambda i: (i, 0, 0)),    # activations
            pl.BlockSpec((D + 3, H), lambda i: (0, 0)),       # packed params
        ],
        out_specs=(
            pl.BlockSpec((TB, D), lambda i: (i, 0)),
            pl.BlockSpec((TB, N), lambda i: (i, 0)),
        ),
        compiler_params=pltpu.CompilerParams(
            dimension_semantics=("parallel",)),
    )(x, params)

    if Bp != B:
        combined = combined[:B]
        attn = attn[:B]
    return combined, attn


def _reference(band_embeddings, w1, b1, w2, b2):
    # Pure-JAX reference matching the PyTorch module.
    h = jnp.tanh(band_embeddings @ w1 + b1)                        # (B, N, H)
    logits = jnp.squeeze(h @ w2.reshape(-1, 1), -1) + b2[0, 0]     # (B, N)
    attn = jax.nn.softmax(logits, axis=1)
    combined = jnp.sum(band_embeddings * attn[:, :, None], axis=1)
    return combined, attn


if __name__ == "__main__":
    # Small shapes consistent with the module: batch=2, num_bands=8, input_dim=32.
    B, N, D = 2, 8, 32
    H = D // 2 if D // 2 > 0 else 1        # attention_hidden_dim default

    key = jax.random.PRNGKey(0)
    kx, kw1, kb1, kw2, kb2 = jax.random.split(key, 5)

    x = jax.random.normal(kx, (B, N, D), dtype=jnp.float32)

    # Deterministic PyTorch-Linear-like uniform init.
    lim1 = 1.0 / jnp.sqrt(D)
    w1 = jax.random.uniform(kw1, (D, H), minval=-lim1, maxval=lim1,
                            dtype=jnp.float32)
    b1 = jax.random.uniform(kb1, (1, H), minval=-lim1, maxval=lim1,
                            dtype=jnp.float32)
    lim2 = 1.0 / jnp.sqrt(H)
    w2 = jax.random.uniform(kw2, (1, H), minval=-lim2, maxval=lim2,
                            dtype=jnp.float32)
    b2 = jax.random.uniform(kb2, (1, 1), minval=-lim2, maxval=lim2,
                            dtype=jnp.float32)

    combined, attn = frequency_self_attention(x, w1, b1, w2, b2)
    jax.block_until_ready((combined, attn))

    ref_combined, ref_attn = _reference(x, w1, b1, w2, b2)
    assert combined.shape == (B, D) and attn.shape == (B, N)
    assert jnp.allclose(combined, ref_combined, atol=1e-5, rtol=1e-5)
    assert jnp.allclose(attn, ref_attn, atol=1e-5, rtol=1e-5)
    assert jnp.allclose(jnp.sum(attn, axis=1), 1.0, atol=1e-5)

    print("KERNEL_OK")
</pallas_src>

<mosaic_0001>
module attributes {stable_mosaic.version = 11 : i64} {
  func.func @_freq_self_attn_kernel(%arg0: i32, %arg1: memref<2x8x32xf32, #tpu.memory_space<vmem>>, %arg2: memref<35x16xf32, #tpu.memory_space<vmem>>, %arg3: memref<2x32xf32, #tpu.memory_space<vmem>>, %arg4: memref<2x8xf32, #tpu.memory_space<vmem>>) attributes {dimension_semantics = [#tpu.dimension_semantics<parallel>], iteration_bounds = array<i64: 1>, scalar_prefetch = 0 : i64, scratch_operands = 0 : i64, tpu.core_type = #tpu.core_type<tc>, window_params = [{transform_indices = @transform_0, window_bounds = array<i64: 2, 8, 32>}, {pipeline_mode = #tpu.pipeline_mode<synchronous>, transform_indices = @transform_1, window_bounds = array<i64: 35, 16>}, {transform_indices = @transform_2, window_bounds = array<i64: 2, 32>}, {transform_indices = @transform_3, window_bounds = array<i64: 2, 8>}]} {
    %c0 = arith.constant 0 : index
    %c0_0 = arith.constant 0 : index
    %c0_1 = arith.constant 0 : index
    %0 = vector.load %arg1[%c0, %c0_0, %c0_1] : memref<2x8x32xf32, #tpu.memory_space<vmem>>, vector<2x8x32xf32>
    %c0_2 = arith.constant 0 : index
    %c0_3 = arith.constant 0 : index
    %1 = vector.load %arg2[%c0_2, %c0_3] : memref<35x16xf32, #tpu.memory_space<vmem>>, vector<32x16xf32>
    %c32 = arith.constant 32 : index
    %c0_4 = arith.constant 0 : index
    %2 = vector.load %arg2[%c32, %c0_4] : memref<35x16xf32, #tpu.memory_space<vmem>>, vector<1x16xf32>
    %3 = vector.shape_cast %2 : vector<1x16xf32> to vector<16xf32>
    %c33 = arith.constant 33 : index
    %c0_5 = arith.constant 0 : index
    %4 = vector.load %arg2[%c33, %c0_5] : memref<35x16xf32, #tpu.memory_space<vmem>>, vector<1x16xf32>
    %5 = vector.shape_cast %4 : vector<1x16xf32> to vector<16xf32>
    %c34 = arith.constant 34 : index
    %c0_6 = arith.constant 0 : index
    %6 = vector.load %arg2[%c34, %c0_6] : memref<35x16xf32, #tpu.memory_space<vmem>>, vector<1x1xf32>
    %7 = vector.extract %6[0, 0] : f32 from vector<1x1xf32>
    %8 = vector.shape_cast %0 : vector<2x8x32xf32> to vector<16x32xf32>
    %cst = arith.constant dense<0.000000e+00> : vector<16x16xf32>
    %9 = tpu.matmul %8, %1, %cst {dimension_numbers = #tpu.dot_dimension_numbers<[1], [0], [0], [1], [0, 0, 1, 1], [], []>} : vector<16x32xf32>, vector<32x16xf32>, vector<16x16xf32> -> vector<16x16xf32>
    %10 = vector.shape_cast %3 : vector<16xf32> to vector<1x16xf32>
    %11 = vector.broadcast %10 : vector<1x16xf32> to vector<16x16xf32>
    %12 = arith.addf %9, %11 : vector<16x16xf32>
    %13 = math.tanh %12 : vector<16x16xf32>
    %14 = vector.shape_cast %13 : vector<16x16xf32> to vector<2x8x16xf32>
    %15 = vector.shape_cast %5 : vector<16xf32> to vector<1x1x16xf32>
    %16 = vector.broadcast %15 : vector<1x1x16xf32> to vector<2x8x16xf32>
    %17 = arith.mulf %14, %16 : vector<2x8x16xf32>
    %cst_7 = arith.constant dense<0.000000e+00> : vector<2x8xf32>
    %18 = vector.multi_reduction <add>, %17, %cst_7 [2] : vector<2x8x16xf32> to vector<2x8xf32>
    %19 = vector.broadcast %7 : f32 to vector<2x8xf32>
    %20 = arith.addf %18, %19 : vector<2x8xf32>
    %cst_8 = arith.constant dense<0xFF800000> : vector<2xf32>
    %21 = vector.multi_reduction <maximumf>, %20, %cst_8 [1] : vector<2x8xf32> to vector<2xf32>
    %22 = vector.shape_cast %21 : vector<2xf32> to vector<2x1xf32>
    %23 = vector.broadcast %22 : vector<2x1xf32> to vector<2x8xf32>
    %24 = arith.subf %20, %23 : vector<2x8xf32>
    %25 = math.exp %24 : vector<2x8xf32>
    %cst_9 = arith.constant dense<0.000000e+00> : vector<2xf32>
    %26 = vector.multi_reduction <add>, %25, %cst_9 [1] : vector<2x8xf32> to vector<2xf32>
    %27 = vector.shape_cast %26 : vector<2xf32> to vector<2x1xf32>
    %28 = tpu.reciprocal %27 : vector<2x1xf32> -> vector<2x1xf32>
    %29 = vector.broadcast %28 : vector<2x1xf32> to vector<2x8xf32>
    %30 = arith.mulf %25, %29 : vector<2x8xf32>
    %c0_10 = arith.constant 0 : index
    %c0_11 = arith.constant 0 : index
    %31 = vector.load %arg4[%c0_10, %c0_11] : memref<2x8xf32, #tpu.memory_space<vmem>>, vector<2x8xf32>
    tpu.vector_store %arg4[%c0_10, %c0_11], %30 {strides = array<i32>} : memref<2x8xf32, #tpu.memory_space<vmem>>, vector<2x8xf32>,
    %32 = vector.shape_cast %30 : vector<2x8xf32> to vector<2x1x8xf32>
    "tpu.trace_start"() <{level = 10 : i32, message = "bqn,bnd->bqd"}> : () -> ()
    %cst_12 = arith.constant dense<0.000000e+00> : vector<2x1x32xf32>
    %33 = tpu.matmul %32, %0, %cst_12 {dimension_numbers = #tpu.dot_dimension_numbers<[2], [1], [1], [2], [0, 0, 0, 1, 1, 2], [0], [0]>} : vector<2x1x8xf32>, vector<2x8x32xf32>, vector<2x1x32xf32> -> vector<2x1x32xf32>
    "tpu.trace_stop"() : () -> ()
    %34 = vector.shape_cast %33 : vector<2x1x32xf32> to vector<2x32xf32>
    %c0_13 = arith.constant 0 : index
    %c0_14 = arith.constant 0 : index
    %35 = vector.load %arg3[%c0_13, %c0_14] : memref<2x32xf32, #tpu.memory_space<vmem>>, vector<2x32xf32>
    tpu.vector_store %arg3[%c0_13, %c0_14], %34 {strides = array<i32>} : memref<2x32xf32, #tpu.memory_space<vmem>>, vector<2x32xf32>,
    return
  }
  func.func @transform_0(%arg0: i32) -> (i32, i32, i32) {
    %c0_i32 = arith.constant 0 : i32
    %c0_i32_0 = arith.constant 0 : i32
    %c0_i32_1 = arith.constant 0 : i32
    return %arg0, %c0_i32, %c0_i32_0 : i32, i32, i32
  }
  func.func @transform_1(%arg0: i32) -> (i32, i32) {
    %c0_i32 = arith.constant 0 : i32
    %c0_i32_0 = arith.constant 0 : i32
    %c0_i32_1 = arith.constant 0 : i32
    return %c0_i32, %c0_i32_0 : i32, i32
  }
  func.func @transform_2(%arg0: i32) -> (i32, i32) {
    %c0_i32 = arith.constant 0 : i32
    %c0_i32_0 = arith.constant 0 : i32
    return %arg0, %c0_i32 : i32, i32
  }
  func.func @transform_3(%arg0: i32) -> (i32, i32) {
    %c0_i32 = arith.constant 0 : i32
    %c0_i32_0 = arith.constant 0 : i32
    return %arg0, %c0_i32 : i32, i32
  }
}

</mosaic_0001>

<llo_original>
// kernel: tpu_custom_call.1
$region0: #{tpu_custom_call.1}
  #allocation0 [shape = 'u32[]', space=smem, size = 0x4, offset = 0x4, fixed_abs, tag = 'smem constant byte address 0x4 - core index']
  #allocation1 [shape = 'u32[144,128]{1,0:T(1,128)}', space=vmem, size = 0x12000, scoped, tag = 'internal scratch']
  %s0 = inlined_call_operand.vmem [shape: f32[2,8,32], index: 0, kind: input, shape index: {}]
  %s1 = inlined_call_operand.vmem [shape: f32[35,16], index: 1, kind: input, shape index: {}]
  %s2 = inlined_call_operand.hbm [shape: f32[2,32], index: 2, kind: output, shape index: {0}]
  %s3 = inlined_call_operand.hbm [shape: f32[2,8], index: 3, kind: output, shape index: {1}]
  %4 = xla_tuple %s2, %s3
  %s5 = sld [smem:[#allocation0]]
  $region26: #{tpu_custom_call.1} parent=0
    _
  %s7 = ssub.s32 1, %s5
  %s8 = scalar_select 0, %s7, %s5
  $region1: #{tpu_custom_call.1} parent=0
    #allocation2 [shape = 'u8[1024]{0}', space=vmem, size = 0x400, scoped, tag = 'output window, operand 0, single buffered']
    #allocation3 [shape = 's32[1]{0}', space=sflag, size = 0x4, scoped, tag = 'scoped memory for tpu_custom_call.1']
    #allocation4 [shape = 'u8[1024]{0}', space=vmem, size = 0x400, scoped, tag = 'output window, operand 1, single buffered']
    #allocation5 [shape = 's32[1]{0}', space=sflag, size = 0x4, scoped, tag = 'scoped memory for tpu_custom_call.1']
    %9 = vsyncpa [#allocation3], 0
    %10 = vsyncpa [#allocation5], 0
    // Predicated region
    $region2: #{tpu_custom_call.1} parent=1 // pred_check
      _
    $region3: #{tpu_custom_call.1} parent=1 // pred_check_branch
      %12 = sbr.rel (0) target = $region5
    $region4: #{tpu_custom_call.1} parent=1 // pred_region
      _
    $region5: #{tpu_custom_call.1} parent=1 // pred_fallthru
      _
    // Predicated region
    $region6: #{tpu_custom_call.1} parent=1 // pred_check
      _
    $region7: #{tpu_custom_call.1} parent=1 // pred_check_branch
      %14 = sbr.rel (0) target = $region9
    $region8: #{tpu_custom_call.1} parent=1 // pred_region
      _
    $region9: #{tpu_custom_call.1} parent=1 // pred_fallthru
      _
    %v15 = vld [vmem:[%s0] sm:$0xff]
    %v16 = vld [vmem:[%s0 + $0x8] sm:$0xff]
    %v17 = vld [vmem:[%s1] sm:$0xff]
    %v18 = vld [vmem:[%s1 + $0x8] sm:$0xff]
    %v19 = vld [vmem:[%s1 + $0x10] sm:$0xff]
    %v20 = vld [vmem:[%s1 + $0x18] sm:$0xff]
    %v21 = vld [vmem:[%s1 + $0x20] sm:$0x1]
    %v22 = vld [vmem:[%s1 + $0x21] sm:$0x1]
    %v23 = vld [vmem:[%s1 + $0x22] sm:$0x1]
    %s24 = vtos %v23
    %v25 = vlaneseq
    %v26 = vshrl.u32 %v25, 7
    %v27 = vsub.s32 0, %v26
    %v28 = vrot.slane %v21, %v27
    %vm29 = vcmask 261120
    %v31 = vsel %vm29, %v15, 0
    %v34 = vsel %vm29, %v16, 0
    %36 = vmatprep.subr.mxu0 0.0
    %37 = vmatpush1.msra.mxu0 0.0
    %38 = vmatprep.subr.mxu0 0.0
    %39 = vmatpush1.msra.mxu0 0.0
    %40 = vmatprep.subr.mxu0 0.0
    %41 = vmatpush1.msra.mxu0 0.0
    %42 = vmatprep.subr.mxu0 0.0
    %43 = vmatpush1.msra.mxu0 0.0
    %44 = vmatprep.subr.mxu0 0.0
    %45 = vmatpush1.msra.mxu0 0.0
    %46 = vmatprep.subr.mxu0 0.0
    %47 = vmatpush1.msra.mxu0 0.0
    %48 = vmatprep.subr.mxu0 0.0
    %49 = vmatpush1.msra.mxu0 0.0
    %50 = vmatprep.subr.mxu0 0.0
    %51 = vmatpush1.msra.mxu0 0.0
    %52 = vmatprep.subr.mxu0 0.0
    %53 = vmatpush1.msra.mxu0 0.0
    %54 = vmatprep.subr.mxu0 0.0
    %55 = vmatpush1.msra.mxu0 0.0
    %56 = vmatprep.subr.mxu0 0.0
    %57 = vmatpush1.msra.mxu0 0.0
    %58 = vmatprep.subr.mxu0 0.0
    %59 = vmatpush1.msra.mxu0 0.0
    %60 = vmatprep.subr.mxu0 0.0
    %61 = vmatpush1.msra.mxu0 %v20
    %62 = vmatprep.subr.mxu0 0.0
    %63 = vmatpush1.msra.mxu0 %v19
    %64 = vmatprep.subr.mxu0 0.0
    %65 = vmatpush1.msra.mxu0 %v18
    %66 = vmatprep.subr.mxu0 0.0
    %67 = vmatpush1.msra.mxu0 %v17
    %68 = vmatprep.subr.mxu0 0.0
    %69 = vmatpush2.msra.mxu0 0.0
    %70 = vmatprep.subr.mxu0 0.0
    %71 = vmatpush2.msra.mxu0 0.0
    %72 = vmatprep.subr.mxu0 0.0
    %73 = vmatpush2.msra.mxu0 0.0
    %74 = vmatprep.subr.mxu0 0.0
    %75 = vmatpush2.msra.mxu0 0.0
    %76 = vmatprep.subr.mxu0 0.0
    %77 = vmatpush2.msra.mxu0 0.0
    %78 = vmatprep.subr.mxu0 0.0
    %79 = vmatpush2.msra.mxu0 0.0
    %80 = vmatprep.subr.mxu0 0.0
    %81 = vmatpush2.msra.mxu0 0.0
    %82 = vmatprep.subr.mxu0 0.0
    %83 = vmatpush2.msra.mxu0 0.0
    %84 = vmatprep.subr.mxu0 0.0
    %85 = vmatpush2.msra.mxu0 0.0
    %86 = vmatprep.subr.mxu0 0.0
    %87 = vmatpush2.msra.mxu0 0.0
    %88 = vmatprep.subr.mxu0 0.0
    %89 = vmatpush2.msra.mxu0 0.0
    %90 = vmatprep.subr.mxu0 0.0
    %91 = vmatpush2.msra.mxu0 0.0
    %92 = vmatprep.subr.mxu0 0.0
    %93 = vmatpush2.msra.mxu0 0.0
    %94 = vmatprep.subr.mxu0 0.0
    %95 = vmatpush2.msra.mxu0 0.0
    %96 = vmatprep.subr.mxu0 0.0
    %97 = vmatpush2.msra.mxu0 0.0
    %98 = vmatprep.subr.mxu0 0.0
    %99 = vmatpush2.msra.mxu0 0.0
    %100 = vmatprep.mubr.f32.mxu0 0.0
    %101 = vmatmul.mubr.f32.gmra.mxu0 %v31
    %v102 = vpop.f32.mrf.mxu0
    %v103 = vadd.f32 %v28, %v102
    %v104 = vpop.f32.mrf.mxu0
    %105 = vmatprep.mubr.f32.mxu0 0.0
    %106 = vmatmul.mubr.f32.gmra.mxu0 %v34
    %v107 = vpop.f32.mrf.mxu0
    %v108 = vadd.f32 %v28, %v107
    %v109 = vpop.f32.mrf.mxu0
    %110 = vdwg.mxu0
    %v111 = vtanh.pop %v103
    %v112 = vtanh.pop %v108
    %v113 = vlaneseq
    %v114 = vshrl.u32 %v113, 7
    %v115 = vsub.s32 0, %v114
    %v116 = vrot.slane %v22, %v115
    %v117 = vmul.f32 %v111, %v116
    %v118 = vmul.f32 %v112, %v116
    %vm119 = vcmask 130048
    %v120 = vsel %vm119, %v117, 0.0
    %121 = vadd.xlane.f32.xlu0 %v120
    %v122 = vpop.xlane.xlu0 %121
    %v123 = vsel %vm119, %v118, 0.0
    %124 = vadd.xlane.f32.xlu0 %v123
    %v125 = vpop.xlane.xlu0 %124
    %v126 = vstv %s24
    %v127 = vadd.f32 %v122, %v126
    %v128 = vadd.f32 %v125, %v126
    %v131 = vlaneseq
    %v132 = vand.u32 %v131, 127
    %v133 = vlaneseq
    %v134 = vshrl.u32 %v133, 7
    %v135 = vsub.s32 %v132, %v134
    %v136 = vrot.slane %v127, %v135
    %v137 = vlaneseq
    %v138 = vshrl.u32 %v137, 7
    %v139 = vsub.s32 %v132, %v138
    %v140 = vrot.slane %v128, %v139
    %vm141 = vcmask 1041409
    %v142 = vsel %vm141, %v140, %v136
    %vm144 = vcmask 58368
    %v145 = vsel %vm144, %v142, -inf
    %146 = vmax.xlane.f32.xlu0 %v145
    %v147 = vpop.xlane.xlu0 %146
    %v149 = vlaneseq
    %v150 = vshrl.u32 %v149, 7
    %v151 = vsub.s32 0, %v150
    %v152 = vrot.slane %v147, %v151
    %v153 = vlaneseq
    %v154 = vshrl.u32 %v153, 7
    %v155 = vsub.s32 1, %v154
    %v156 = vrot.slane %v147, %v155
    %v159 = vsub.f32 %v127, %v152
    %v160 = vsub.f32 %v128, %v156
    %v161 = vmul.f32 %v159, 1.442695
    %v162 = vpow.pop %v161
    %v163 = vmul.f32 %v160, 1.442695
    %v164 = vpow.pop %v163
    %167 = vset.pattern.permute.xlu0 0
    %168 = vperm.xlu0 %167, %v162
    %v169 = vpop.permute.xlu0 %168
    %170 = vset.pattern.permute.xlu0 0
    %171 = vperm.xlu0 %170, %v164
    %v172 = vpop.permute.xlu0 %171
    %v173 = vlaneseq
    %v174 = vshrl.u32 %v173, 7
    %v175 = vsub.s32 %v132, %v174
    %v176 = vrot.slane %v169, %v175
    %v177 = vlaneseq
    %v178 = vshrl.u32 %v177, 7
    %v179 = vsub.s32 %v132, %v178
    %v180 = vrot.slane %v172, %v179
    %v181 = vsel %vm141, %v180, %v176
    %v183 = vsel %vm144, %v181, 0.0
    %184 = vadd.xlane.f32.xlu0 %v183
    %v185 = vpop.xlane.xlu0 %184
    %v186 = vrcp.pop %v185
    %v188 = vlaneseq
    %v189 = vshrl.u32 %v188, 7
    %v190 = vsub.s32 0, %v189
    %v191 = vrot.slane %v186, %v190
    %v192 = vlaneseq
    %v193 = vshrl.u32 %v192, 7
    %v194 = vsub.s32 1, %v193
    %v195 = vrot.slane %v186, %v194
    %v198 = vmul.f32 %v162, %v191
    %v199 = vmul.f32 %v164, %v195
    %202 = vset.pattern.permute.xlu0 0
    %203 = vperm.xlu0 %202, %v198
    %v204 = vpop.permute.xlu0 %203
    %205 = vset.pattern.permute.xlu0 0
    %206 = vperm.xlu0 %205, %v199
    %v207 = vpop.permute.xlu0 %206
    %v208 = vlaneseq
    %v209 = vshrl.u32 %v208, 7
    %v210 = vsub.s32 %v132, %v209
    %v211 = vrot.slane %v204, %v210
    %v212 = vlaneseq
    %v213 = vshrl.u32 %v212, 7
    %v214 = vsub.s32 %v132, %v213
    %v215 = vrot.slane %v207, %v214
    %v216 = vsel %vm141, %v215, %v211
    %218 = vst.msk [vmem:[#allocation4] sm:$0x3] %vm144, %v216
    %vm219 = vcmask 64512
    %v220 = vsel %vm219, %v211, 0
    %222 = vmatprep.subr.mxu0 0.0
    %223 = vmatpush1.msra.mxu0 0.0
    %224 = vmatprep.subr.mxu0 0.0
    %225 = vmatpush1.msra.mxu0 0.0
    %226 = vmatprep.subr.mxu0 0.0
    %227 = vmatpush1.msra.mxu0 0.0
    %228 = vmatprep.subr.mxu0 0.0
    %229 = vmatpush1.msra.mxu0 0.0
    %230 = vmatprep.subr.mxu0 0.0
    %231 = vmatpush1.msra.mxu0 0.0
    %232 = vmatprep.subr.mxu0 0.0
    %233 = vmatpush1.msra.mxu0 0.0
    %234 = vmatprep.subr.mxu0 0.0
    %235 = vmatpush1.msra.mxu0 0.0
    %236 = vmatprep.subr.mxu0 0.0
    %237 = vmatpush1.msra.mxu0 0.0
    %238 = vmatprep.subr.mxu0 0.0
    %239 = vmatpush1.msra.mxu0 0.0
    %240 = vmatprep.subr.mxu0 0.0
    %241 = vmatpush1.msra.mxu0 0.0
    %242 = vmatprep.subr.mxu0 0.0
    %243 = vmatpush1.msra.mxu0 0.0
    %244 = vmatprep.subr.mxu0 0.0
    %245 = vmatpush1.msra.mxu0 0.0
    %246 = vmatprep.subr.mxu0 0.0
    %247 = vmatpush1.msra.mxu0 0.0
    %248 = vmatprep.subr.mxu0 0.0
    %249 = vmatpush1.msra.mxu0 0.0
    %250 = vmatprep.subr.mxu0 0.0
    %251 = vmatpush1.msra.mxu0 0.0
    %252 = vmatprep.subr.mxu0 0.0
    %253 = vmatpush1.msra.mxu0 %v15
    %254 = vmatprep.subr.mxu0 0.0
    %255 = vmatpush2.msra.mxu0 0.0
    %256 = vmatprep.subr.mxu0 0.0
    %257 = vmatpush2.msra.mxu0 0.0
    %258 = vmatprep.subr.mxu0 0.0
    %259 = vmatpush2.msra.mxu0 0.0
    %260 = vmatprep.subr.mxu0 0.0
    %261 = vmatpush2.msra.mxu0 0.0
    %262 = vmatprep.subr.mxu0 0.0
    %263 = vmatpush2.msra.mxu0 0.0
    %264 = vmatprep.subr.mxu0 0.0
    %265 = vmatpush2.msra.mxu0 0.0
    %266 = vmatprep.subr.mxu0 0.0
    %267 = vmatpush2.msra.mxu0 0.0
    %268 = vmatprep.subr.mxu0 0.0
    %269 = vmatpush2.msra.mxu0 0.0
    %270 = vmatprep.subr.mxu0 0.0
    %271 = vmatpush2.msra.mxu0 0.0
    %272 = vmatprep.subr.mxu0 0.0
    %273 = vmatpush2.msra.mxu0 0.0
    %274 = vmatprep.subr.mxu0 0.0
    %275 = vmatpush2.msra.mxu0 0.0
    %276 = vmatprep.subr.mxu0 0.0
    %277 = vmatpush2.msra.mxu0 0.0
    %278 = vmatprep.subr.mxu0 0.0
    %279 = vmatpush2.msra.mxu0 0.0
    %280 = vmatprep.subr.mxu0 0.0
    %281 = vmatpush2.msra.mxu0 0.0
    %282 = vmatprep.subr.mxu0 0.0
    %283 = vmatpush2.msra.mxu0 0.0
    %284 = vmatprep.subr.mxu0 0.0
    %285 = vmatpush2.msra.mxu0 0.0
    %286 = vmatprep.mubr.f32.mxu0 0.0
    %287 = vmatmul.mubr.f32.gmra.mxu0 %v220
    %v288 = vpop.f32.mrf.mxu0
    %v289 = vadd.f32 0.0, %v288
    %v290 = vpop.f32.mrf.mxu0
    %291 = vdwg.mxu0
    %v292 = vsel %vm219, %v215, 0
    %294 = vmatprep.subr.mxu0 0.0
    %295 = vmatpush1.msra.mxu0 0.0
    %296 = vmatprep.subr.mxu0 0.0
    %297 = vmatpush1.msra.mxu0 0.0
    %298 = vmatprep.subr.mxu0 0.0
    %299 = vmatpush1.msra.mxu0 0.0
    %300 = vmatprep.subr.mxu0 0.0
    %301 = vmatpush1.msra.mxu0 0.0
    %302 = vmatprep.subr.mxu0 0.0
    %303 = vmatpush1.msra.mxu0 0.0
    %304 = vmatprep.subr.mxu0 0.0
    %305 = vmatpush1.msra.mxu0 0.0
    %306 = vmatprep.subr.mxu0 0.0
    %307 = vmatpush1.msra.mxu0 0.0
    %308 = vmatprep.subr.mxu0 0.0
    %309 = vmatpush1.msra.mxu0 0.0
    %310 = vmatprep.subr.mxu0 0.0
    %311 = vmatpush1.msra.mxu0 0.0
    %312 = vmatprep.subr.mxu0 0.0
    %313 = vmatpush1.msra.mxu0 0.0
    %314 = vmatprep.subr.mxu0 0.0
    %315 = vmatpush1.msra.mxu0 0.0
    %316 = vmatprep.subr.mxu0 0.0
    %317 = vmatpush1.msra.mxu0 0.0
    %318 = vmatprep.subr.mxu0 0.0
    %319 = vmatpush1.msra.mxu0 0.0
    %320 = vmatprep.subr.mxu0 0.0
    %321 = vmatpush1.msra.mxu0 0.0
    %322 = vmatprep.subr.mxu0 0.0
    %323 = vmatpush1.msra.mxu0 0.0
    %324 = vmatprep.subr.mxu0 0.0
    %325 = vmatpush1.msra.mxu0 %v16
    %326 = vmatprep.subr.mxu0 0.0
    %327 = vmatpush2.msra.mxu0 0.0
    %328 = vmatprep.subr.mxu0 0.0
    %329 = vmatpush2.msra.mxu0 0.0
    %330 = vmatprep.subr.mxu0 0.0
    %331 = vmatpush2.msra.mxu0 0.0
    %332 = vmatprep.subr.mxu0 0.0
    %333 = vmatpush2.msra.mxu0 0.0
    %334 = vmatprep.subr.mxu0 0.0
    %335 = vmatpush2.msra.mxu0 0.0
    %336 = vmatprep.subr.mxu0 0.0
    %337 = vmatpush2.msra.mxu0 0.0
    %338 = vmatprep.subr.mxu0 0.0
    %339 = vmatpush2.msra.mxu0 0.0
    %340 = vmatprep.subr.mxu0 0.0
    %341 = vmatpush2.msra.mxu0 0.0
    %342 = vmatprep.subr.mxu0 0.0
    %343 = vmatpush2.msra.mxu0 0.0
    %344 = vmatprep.subr.mxu0 0.0
    %345 = vmatpush2.msra.mxu0 0.0
    %346 = vmatprep.subr.mxu0 0.0
    %347 = vmatpush2.msra.mxu0 0.0
    %348 = vmatprep.subr.mxu0 0.0
    %349 = vmatpush2.msra.mxu0 0.0
    %350 = vmatprep.subr.mxu0 0.0
    %351 = vmatpush2.msra.mxu0 0.0
    %352 = vmatprep.subr.mxu0 0.0
    %353 = vmatpush2.msra.mxu0 0.0
    %354 = vmatprep.subr.mxu0 0.0
    %355 = vmatpush2.msra.mxu0 0.0
    %356 = vmatprep.subr.mxu0 0.0
    %357 = vmatpush2.msra.mxu0 0.0
    %358 = vmatprep.mubr.f32.mxu0 0.0
    %359 = vmatmul.mubr.f32.gmra.mxu0 %v292
    %v360 = vpop.f32.mrf.mxu0
    %v361 = vadd.f32 0.0, %v360
    %v362 = vpop.f32.mrf.mxu0
    %363 = vdwg.mxu0
    %v366 = vrot.slane %v361, 7
    %v367 = vsel %vm141, %v366, %v289
    %vm369 = vcmask 254976
    %370 = vst.msk [vmem:[#allocation2] sm:$0x3] %vm369, %v367
    // Predicated region
    $region10: #{tpu_custom_call.1} parent=1 // pred_check
      _
    $region11: #{tpu_custom_call.1} parent=1 // pred_check_branch
      %372 = sbr.rel (0) target = $region13
    $region12: #{tpu_custom_call.1} parent=1 // pred_region
      %s374 = ssub.s32 32, 32
      %375 = vsyncadd [#allocation3], %s374
      %s377 = sshll.u32 [#allocation2], 4
      %s378 = int_to_ptr.vmem [resolvable:$true] %s377
      %380 = dma.vmem_to_hbm [thread:$0]  %s378, 32, %s2, [#allocation3]
    $region13: #{tpu_custom_call.1} parent=1 // pred_fallthru
      _
    // Predicated region
    $region14: #{tpu_custom_call.1} parent=1 // pred_check
      _
    $region15: #{tpu_custom_call.1} parent=1 // pred_check_branch
      %382 = sbr.rel (0) target = $region17
    $region16: #{tpu_custom_call.1} parent=1 // pred_region
      %s384 = ssub.s32 32, 32
      %385 = vsyncadd [#allocation5], %s384
      %s387 = sshll.u32 [#allocation4], 4
      %s388 = int_to_ptr.vmem [resolvable:$true] %s387
      %390 = dma.vmem_to_hbm [thread:$0]  %s388, 32, %s3, [#allocation5]
    $region17: #{tpu_custom_call.1} parent=1 // pred_fallthru
      _
    // Predicated region
    $region18: #{tpu_custom_call.1} parent=1 // pred_check
      _
    $region19: #{tpu_custom_call.1} parent=1 // pred_check_branch
      %392 = sbr.rel (0) target = $region21
    $region20: #{tpu_custom_call.1} parent=1 // pred_region
      %393 = dma.done [#allocation3], 32
    $region21: #{tpu_custom_call.1} parent=1 // pred_fallthru
      _
    // Predicated region
    $region22: #{tpu_custom_call.1} parent=1 // pred_check
      _
    $region23: #{tpu_custom_call.1} parent=1 // pred_check_branch
      %395 = sbr.rel (0) target = $region25
    $region24: #{tpu_custom_call.1} parent=1 // pred_region
      %396 = dma.done [#allocation5], 32
    $region25: #{tpu_custom_call.1} parent=1 // pred_fallthru
      _
    %397 = vsyncpa [#allocation3], 1
    %398 = vsyncpa [#allocation5], 1

</llo_original>
